<compile_context>
chip_gen: v7x
topology: tpu7x:2x2x1
jax: 0.10.0
libtpu: 0.0.40
codegen_flags: <defaults>
</compile_context>

<pallas_src>
import jax
import jax.numpy as jnp
from jax.experimental import pallas as pl
from jax.experimental.pallas import tpu as pltpu

_BN_EPS = 1e-5


def _round_up(x, m):
    return ((x + m - 1) // m) * m


def _largest_divisor(total, multiple, cap):
    """Largest divisor of `total` that is a multiple of `multiple` and <= cap."""
    best = multiple
    for cand in range(multiple, min(cap, total) + 1, multiple):
        if total % cand == 0:
            best = cand
    return best


def _add_attr_head_kernel(x_ref, w_ref, b_ref, o_ref, acc_ref):
    # x_ref  : [tile_n, tile_c, HW]   features (native NCHW layout), upstream dtype
    # w_ref  : [tile_c, K_pad] f32    fused weight  = W^T * gamma*rsqrt(var+eps) / HW
    # b_ref  : [1, K_pad]      f32    fused bias    = beta - mean*gamma*rsqrt(var+eps)
    # o_ref  : [tile_n, K_pad] f32    output block (resident across the c reduction axis)
    # acc_ref: [tile_n, K_pad] f32    logits accumulator (VMEM scratch)
    j = pl.program_id(1)

    @pl.when(j == 0)
    def _():
        acc_ref[...] = jnp.zeros_like(acc_ref)

    # Spatial sum-pool of this channel slab: lane-axis (HW) reduction; channels stay
    # on sublanes, so the bulk of the work is plain VALU adds over lane chunks.
    pooled = jnp.sum(x_ref[...].astype(jnp.float32), axis=-1)        # [tile_n, tile_c]

    # Partial classifier contraction over this channel slab (MXU), accumulated in f32.
    acc_ref[...] += jnp.dot(pooled, w_ref[...],
                            preferred_element_type=jnp.float32)

    @pl.when(j == pl.num_programs(1) - 1)
    def _():
        o_ref[...] = (acc_ref[...] + b_ref[...]).astype(o_ref.dtype)


def add_attr_head_forward(features_nchw, cls_weight, bn_gamma, bn_beta,
                          bn_running_mean, bn_running_var,
                          *, tile_n=None, tile_c=None, x_block_bytes=4 << 20):
    """features_nchw: [N, C, H, W]; cls_weight: [K, C] (PyTorch Linear layout)."""
    N, C, H, W = features_nchw.shape
    K = cls_weight.shape[0]
    HW = H * W
    isz = features_nchw.dtype.itemsize

    # ---- Fold eval-mode BN + 1/HW pooling scale into classifier weight / bias ----
    scale = bn_gamma.astype(jnp.float32) * jax.lax.rsqrt(
        bn_running_var.astype(jnp.float32) + _BN_EPS)                       # [K]
    w_fused = jnp.transpose(cls_weight.astype(jnp.float32)) * (scale / HW)  # [C, K]
    b_fused = (bn_beta.astype(jnp.float32)
               - bn_running_mean.astype(jnp.float32) * scale)               # [K]

    # Features stay in their native NCHW layout; collapsing (H, W) is metadata-only,
    # so the kernel streams the tensor from HBM exactly once (no wrapper relayout).
    x = features_nchw.reshape(N, C, HW)

    # ---- Batch tiling (sublane dim of the pooled / output operands) ----
    n_pad = _round_up(max(N, 8), 8)
    if tile_n is None:
        tile_n = _largest_divisor(n_pad, 8, 64)
    assert tile_n % 8 == 0 and n_pad % tile_n == 0
    if n_pad != N:
        x = jnp.pad(x, ((0, n_pad - N), (0, 0), (0, 0)))

    # ---- Channel tiling (matmul contraction = grid reduction axis, kept last) ----
    if tile_c is None:
        if C % 8 == 0:
            cap = max(8, (x_block_bytes // max(1, tile_n * HW * isz)) // 8 * 8)
            tile_c = _largest_divisor(C, 8, cap)
        else:
            tile_c = C          # full-C block (full array dim is always layout-legal)
    assert C % tile_c == 0 and (tile_c % 8 == 0 or tile_c == C)
    # TODO(synk): for very large H*W a full-spatial block may not fit VMEM; that case
    # would need an extra spatial grid axis with a pooled-sum scratch accumulator.

    k_pad = _round_up(K, 128)   # lane-dense, unmasked output stores
    w_fused = jnp.pad(w_fused, ((0, 0), (0, k_pad - K)))
    b_fused = jnp.pad(b_fused, ((0, k_pad - K),)).reshape(1, k_pad)

    grid = (n_pad // tile_n, C // tile_c)

    # Explicit VMEM budget: double-buffered blocks + scratch, with headroom.
    vmem_bytes = (2 * tile_n * tile_c * HW * isz   # feature block (double-buffered)
                  + 2 * tile_c * k_pad * 4         # fused-weight block
                  + 2 * 8 * k_pad * 4              # fused bias (sublane-padded)
                  + 2 * tile_n * k_pad * 4         # output block
                  + tile_n * k_pad * 4)            # accumulator scratch
    vmem_limit = int(min(max(2 * vmem_bytes, 32 << 20), 64 << 20))

    out_padded = pl.pallas_call(
        _add_attr_head_kernel,
        out_shape=jax.ShapeDtypeStruct((n_pad, k_pad), jnp.float32),
        grid=grid,
        in_specs=[
            pl.BlockSpec((tile_n, tile_c, HW), lambda i, j: (i, j, 0)),
            pl.BlockSpec((tile_c, k_pad), lambda i, j: (j, 0)),
            pl.BlockSpec((1, k_pad), lambda i, j: (0, 0)),
        ],
        out_specs=pl.BlockSpec((tile_n, k_pad), lambda i, j: (i, 0)),
        scratch_shapes=[pltpu.VMEM((tile_n, k_pad), jnp.float32)],
        compiler_params=pltpu.CompilerParams(
            dimension_semantics=("parallel", "arbitrary"),
            vmem_limit_bytes=vmem_limit),
    )(x, w_fused, b_fused)

    return {"cls_outputs": out_padded[:N, :K]}


def _reference_forward(features_nchw, cls_weight, bn_gamma, bn_beta, bn_mean, bn_var):
    pooled = jnp.mean(features_nchw.astype(jnp.float32), axis=(2, 3))     # [N, C]
    logits = pooled @ cls_weight.astype(jnp.float32).T                    # [N, K]
    return (logits - bn_mean) / jnp.sqrt(bn_var + _BN_EPS) * bn_gamma + bn_beta


if __name__ == "__main__":
    # Small, deterministic synthetic setup.
    N, C, H, W = 2, 32, 16, 16   # batch, feat_dim (IN_FEAT), spatial
    K = 16                       # num attribute classes

    key = jax.random.PRNGKey(0)
    k_feat, k_w, k_g, k_b, k_m, k_v = jax.random.split(key, 6)

    features = jax.random.normal(k_feat, (N, C, H, W), dtype=jnp.float32)

    # weights_init_classifier: Linear weight ~ N(0, 0.001), no bias.
    cls_weight = 0.001 * jax.random.normal(k_w, (K, C), dtype=jnp.float32)

    # BatchNorm1d params / running stats (non-trivial values to exercise the BN fold).
    bn_gamma = 1.0 + 0.1 * jax.random.normal(k_g, (K,), dtype=jnp.float32)
    bn_beta = 0.05 * jax.random.normal(k_b, (K,), dtype=jnp.float32)
    bn_running_mean = 0.01 * jax.random.normal(k_m, (K,), dtype=jnp.float32)
    bn_running_var = 1.0 + 0.1 * jax.random.uniform(k_v, (K,), dtype=jnp.float32)
    # TODO(synk): training-mode BatchNorm1d (batch statistics + running-stat update) is a
    # stateful op; this kernel implements the eval-mode (running-stats) normalization.

    ref = _reference_forward(features, cls_weight, bn_gamma, bn_beta,
                             bn_running_mean, bn_running_var)

    # 1) Default tiling (single channel slab at this small size).
    out = add_attr_head_forward(features, cls_weight, bn_gamma, bn_beta,
                                bn_running_mean, bn_running_var)
    cls_outputs = jax.block_until_ready(out["cls_outputs"])
    assert cls_outputs.shape == (N, K)
    assert jnp.allclose(cls_outputs, ref, atol=1e-5, rtol=1e-5)

    # 2) Force small channel slabs so the multi-step contraction/accumulator path runs.
    out2 = add_attr_head_forward(features, cls_weight, bn_gamma, bn_beta,
                                 bn_running_mean, bn_running_var, tile_c=8)
    cls_outputs2 = jax.block_until_ready(out2["cls_outputs"])
    assert cls_outputs2.shape == (N, K)
    assert jnp.allclose(cls_outputs2, ref, atol=1e-5, rtol=1e-5)

    print("KERNEL_OK")
</pallas_src>

<mosaic_0001>
module attributes {stable_mosaic.version = 11 : i64} {
  func.func @_add_attr_head_kernel(%arg0: i32, %arg1: i32, %arg2: memref<8x32x256xf32, #tpu.memory_space<vmem>>, %arg3: memref<32x128xf32, #tpu.memory_space<vmem>>, %arg4: memref<1x128xf32, #tpu.memory_space<vmem>>, %arg5: memref<8x128xf32, #tpu.memory_space<vmem>>, %arg6: memref<8x128xf32, #tpu.memory_space<vmem>>) attributes {dimension_semantics = [#tpu.dimension_semantics<parallel>, #tpu.dimension_semantics<arbitrary>], iteration_bounds = array<i64: 1, 1>, scalar_prefetch = 0 : i64, scratch_operands = 1 : i64, tpu.core_type = #tpu.core_type<tc>, window_params = [{transform_indices = @transform_0, window_bounds = array<i64: 8, 32, 256>}, {transform_indices = @transform_1, window_bounds = array<i64: 32, 128>}, {pipeline_mode = #tpu.pipeline_mode<synchronous>, transform_indices = @transform_2, window_bounds = array<i64: 1, 128>}, {transform_indices = @transform_3, window_bounds = array<i64: 8, 128>}]} {
    %c0_i32 = arith.constant 0 : i32
    %0 = arith.cmpi eq, %arg1, %c0_i32 : i32
    %1 = arith.extui %0 : i1 to i32
    %c0_i32_0 = arith.constant 0 : i32
    %2 = arith.cmpi ne, %1, %c0_i32_0 : i32
    scf.if %2 {
      %cst_12 = arith.constant 0.000000e+00 : f32
      %13 = vector.broadcast %cst_12 : f32 to vector<8x128xf32>
      %c0_13 = arith.constant 0 : index
      %c0_14 = arith.constant 0 : index
      %14 = vector.load %arg6[%c0_13, %c0_14] : memref<8x128xf32, #tpu.memory_space<vmem>>, vector<8x128xf32>
      tpu.vector_store %arg6[%c0_13, %c0_14], %13 {strides = array<i32>} : memref<8x128xf32, #tpu.memory_space<vmem>>, vector<8x128xf32>,
    } else {
    }
    %c0 = arith.constant 0 : index
    %c0_1 = arith.constant 0 : index
    %c0_2 = arith.constant 0 : index
    %3 = vector.load %arg2[%c0, %c0_1, %c0_2] : memref<8x32x256xf32, #tpu.memory_space<vmem>>, vector<8x32x256xf32>
    %cst = arith.constant dense<0.000000e+00> : vector<8x32xf32>
    %4 = vector.multi_reduction <add>, %3, %cst [2] : vector<8x32x256xf32> to vector<8x32xf32>
    %c0_3 = arith.constant 0 : index
    %c0_4 = arith.constant 0 : index
    %5 = vector.load %arg6[%c0_3, %c0_4] : memref<8x128xf32, #tpu.memory_space<vmem>>, vector<8x128xf32>
    %c0_5 = arith.constant 0 : index
    %c0_6 = arith.constant 0 : index
    %6 = vector.load %arg3[%c0_5, %c0_6] : memref<32x128xf32, #tpu.memory_space<vmem>>, vector<32x128xf32>
    %cst_7 = arith.constant dense<0.000000e+00> : vector<8x128xf32>
    %7 = tpu.matmul %4, %6, %cst_7 {dimension_numbers = #tpu.dot_dimension_numbers<[1], [0], [0], [1], [0, 0, 1, 1], [], []>} : vector<8x32xf32>, vector<32x128xf32>, vector<8x128xf32> -> vector<8x128xf32>
    %8 = arith.addf %5, %7 : vector<8x128xf32>
    %c0_8 = arith.constant 0 : index
    %c0_9 = arith.constant 0 : index
    %9 = vector.load %arg6[%c0_8, %c0_9] : memref<8x128xf32, #tpu.memory_space<vmem>>, vector<8x128xf32>
    tpu.vector_store %arg6[%c0_8, %c0_9], %8 {strides = array<i32>} : memref<8x128xf32, #tpu.memory_space<vmem>>, vector<8x128xf32>,
    %c0_i32_10 = arith.constant 0 : i32
    %10 = arith.cmpi eq, %arg1, %c0_i32_10 : i32
    %11 = arith.extui %10 : i1 to i32
    %c0_i32_11 = arith.constant 0 : i32
    %12 = arith.cmpi ne, %11, %c0_i32_11 : i32
    scf.if %12 {
      %c0_12 = arith.constant 0 : index
      %c0_13 = arith.constant 0 : index
      %13 = vector.load %arg6[%c0_12, %c0_13] : memref<8x128xf32, #tpu.memory_space<vmem>>, vector<8x128xf32>
      %c0_14 = arith.constant 0 : index
      %c0_15 = arith.constant 0 : index
      %14 = vector.load %arg4[%c0_14, %c0_15] : memref<1x128xf32, #tpu.memory_space<vmem>>, vector<1x128xf32>
      %15 = vector.broadcast %14 : vector<1x128xf32> to vector<8x128xf32>
      %16 = arith.addf %13, %15 : vector<8x128xf32>
      %c0_16 = arith.constant 0 : index
      %c0_17 = arith.constant 0 : index
      %17 = vector.load %arg5[%c0_16, %c0_17] : memref<8x128xf32, #tpu.memory_space<vmem>>, vector<8x128xf32>
      tpu.vector_store %arg5[%c0_16, %c0_17], %16 {strides = array<i32>} : memref<8x128xf32, #tpu.memory_space<vmem>>, vector<8x128xf32>,
    } else {
    }
    return
  }
  func.func @transform_0(%arg0: i32, %arg1: i32) -> (i32, i32, i32) {
    %c0_i32 = arith.constant 0 : i32
    %c0_i32_0 = arith.constant 0 : i32
    return %arg0, %arg1, %c0_i32 : i32, i32, i32
  }
  func.func @transform_1(%arg0: i32, %arg1: i32) -> (i32, i32) {
    %c0_i32 = arith.constant 0 : i32
    %c0_i32_0 = arith.constant 0 : i32
    return %arg1, %c0_i32 : i32, i32
  }
  func.func @transform_2(%arg0: i32, %arg1: i32) -> (i32, i32) {
    %c0_i32 = arith.constant 0 : i32
    %c0_i32_0 = arith.constant 0 : i32
    %c0_i32_1 = arith.constant 0 : i32
    return %c0_i32, %c0_i32_0 : i32, i32
  }
  func.func @transform_3(%arg0: i32, %arg1: i32) -> (i32, i32) {
    %c0_i32 = arith.constant 0 : i32
    %c0_i32_0 = arith.constant 0 : i32
    return %arg0, %c0_i32 : i32, i32
  }
}

</mosaic_0001>

<llo_original>
// kernel: tpu_custom_call.1
$region0: #{tpu_custom_call.1}
  #allocation0 [shape = 'u32[]', space=smem, size = 0x4, offset = 0x4, fixed_abs, tag = 'smem constant byte address 0x4 - core index']
  #allocation1 [shape = 'u32[144,128]{1,0:T(1,128)}', space=vmem, size = 0x12000, scoped, tag = 'internal scratch']
  #allocation2 [shape = 'f32[8,128]{1,0:T(8,128)}', space=vmem, size = 0x1000, scoped, tag = 'scratch operand']
  %s0 = inlined_call_operand.hbm [shape: f32[8,32,256], index: 0, kind: input, shape index: {}]
  %s1 = inlined_call_operand.hbm [shape: f32[32,128], index: 1, kind: input, shape index: {}]
  %s2 = inlined_call_operand.vmem [shape: f32[1,128], index: 2, kind: input, shape index: {}]
  %s3 = inlined_call_operand.hbm [shape: f32[8,128], index: 3, kind: output, shape index: {}]
  %s4 = sld [smem:[#allocation0]]
  $region38: #{tpu_custom_call.1} parent=0
    _
  %s6 = ssub.s32 1, %s4
  %s7 = scalar_select 0, %s6, %s4
  $region1: #{tpu_custom_call.1} parent=0
    #allocation3 [shape = 'u8[262144]{0}', space=vmem, size = 0x40000, scoped, tag = 'input window, operand 0, single buffered']
    #allocation4 [shape = 's32[1]{0}', space=sflag, size = 0x4, scoped, tag = 'scoped memory for tpu_custom_call.1']
    #allocation5 [shape = 's32[1]{0}', space=sflag, size = 0x4, scoped, tag = 'scoped memory for tpu_custom_call.1']
    #allocation6 [shape = 'u8[16384]{0}', space=vmem, size = 0x4000, scoped, tag = 'input window, operand 1, single buffered']
    #allocation7 [shape = 's32[1]{0}', space=sflag, size = 0x4, scoped, tag = 'scoped memory for tpu_custom_call.1']
    #allocation8 [shape = 'u8[4096]{0}', space=vmem, size = 0x1000, scoped, tag = 'output window, operand 0, single buffered']
    %8 = vsyncpa [#allocation4], 0
    %9 = vsyncpa [#allocation7], 0
    %10 = vsyncpa [#allocation5], 0
    // Predicated region
    $region2: #{tpu_custom_call.1} parent=1 // pred_check
      _
    $region3: #{tpu_custom_call.1} parent=1 // pred_check_branch
      %12 = sbr.rel (0) target = $region5
    $region4: #{tpu_custom_call.1} parent=1 // pred_region
      %s14 = ssub.s32 8192, 8192
      %15 = vsyncadd [#allocation4], %s14
      %s16 = sshll.u32 [#allocation3], 4
      %s17 = int_to_ptr.vmem [resolvable:$true] %s16
      %22 = dma.hbm_to_vmem [thread:$0]  %s0, 8192, %s17, [#allocation4], 256, 256, 16
    $region5: #{tpu_custom_call.1} parent=1 // pred_fallthru
      _
    // Predicated region
    $region6: #{tpu_custom_call.1} parent=1 // pred_check
      _
    $region7: #{tpu_custom_call.1} parent=1 // pred_check_branch
      %24 = sbr.rel (0) target = $region9
    $region8: #{tpu_custom_call.1} parent=1 // pred_region
      %s26 = ssub.s32 512, 512
      %27 = vsyncadd [#allocation7], %s26
      %s28 = sshll.u32 [#allocation6], 4
      %s29 = int_to_ptr.vmem [resolvable:$true] %s28
      %34 = dma.hbm_to_vmem [thread:$0]  %s1, 512, %s29, [#allocation7], 128, 128, 8
    $region9: #{tpu_custom_call.1} parent=1 // pred_fallthru
      _
    // Predicated region
    $region10: #{tpu_custom_call.1} parent=1 // pred_check
      _
    $region11: #{tpu_custom_call.1} parent=1 // pred_check_branch
      %36 = sbr.rel (0) target = $region13
    $region12: #{tpu_custom_call.1} parent=1 // pred_region
      _
    $region13: #{tpu_custom_call.1} parent=1 // pred_fallthru
      _
    // Predicated region
    $region14: #{tpu_custom_call.1} parent=1 // pred_check
      _
    $region15: #{tpu_custom_call.1} parent=1 // pred_check_branch
      %38 = sbr.rel (0) target = $region17
    $region16: #{tpu_custom_call.1} parent=1 // pred_region
      %39 = dma.done [#allocation4], 8192
    $region17: #{tpu_custom_call.1} parent=1 // pred_fallthru
      _
    // Predicated region
    $region18: #{tpu_custom_call.1} parent=1 // pred_check
      _
    $region19: #{tpu_custom_call.1} parent=1 // pred_check_branch
      %41 = sbr.rel (0) target = $region21
    $region20: #{tpu_custom_call.1} parent=1 // pred_region
      %42 = dma.done [#allocation7], 512
    $region21: #{tpu_custom_call.1} parent=1 // pred_fallthru
      _
    %p43 = scmp.eq.s32.totalorder 0, 0
    // Predicated region
    $region22: #{tpu_custom_call.1} parent=1 // pred_check
      %p44 = pneg %p43
    $region23: #{tpu_custom_call.1} parent=1 // pred_check_branch
      %46 = sbr.rel (%p44) target = $region25
    $region24: #{tpu_custom_call.1} parent=1 // pred_region
      %47 = vst [vmem:[#allocation2] sm:$0xff] 0.0
    $region25: #{tpu_custom_call.1} parent=1 // pred_fallthru
      _
    %v48 = vld [vmem:[#allocation3] sm:$0xff]
    %v49 = vld [vmem:[#allocation3 + $0x8] sm:$0xff]
    %v50 = vld [vmem:[#allocation3 + $0x10] sm:$0xff]
    %v51 = vld [vmem:[#allocation3 + $0x18] sm:$0xff]
    %v52 = vld [vmem:[#allocation3 + $0x20] sm:$0xff]
    %v53 = vld [vmem:[#allocation3 + $0x28] sm:$0xff]
    %v54 = vld [vmem:[#allocation3 + $0x30] sm:$0xff]
    %v55 = vld [vmem:[#allocation3 + $0x38] sm:$0xff]
    %v56 = vld [vmem:[#allocation3 + $0x40] sm:$0xff]
    %v57 = vld [vmem:[#allocation3 + $0x48] sm:$0xff]
    %v58 = vld [vmem:[#allocation3 + $0x50] sm:$0xff]
    %v59 = vld [vmem:[#allocation3 + $0x58] sm:$0xff]
    %v60 = vld [vmem:[#allocation3 + $0x60] sm:$0xff]
    %v61 = vld [vmem:[#allocation3 + $0x68] sm:$0xff]
    %v62 = vld [vmem:[#allocation3 + $0x70] sm:$0xff]
    %v63 = vld [vmem:[#allocation3 + $0x78] sm:$0xff]
    %v64 = vld [vmem:[#allocation3 + $0x80] sm:$0xff]
    %v65 = vld [vmem:[#allocation3 + $0x88] sm:$0xff]
    %v66 = vld [vmem:[#allocation3 + $0x90] sm:$0xff]
    %v67 = vld [vmem:[#allocation3 + $0x98] sm:$0xff]
    %v68 = vld [vmem:[#allocation3 + $0xa0] sm:$0xff]
    %v69 = vld [vmem:[#allocation3 + $0xa8] sm:$0xff]
    %v70 = vld [vmem:[#allocation3 + $0xb0] sm:$0xff]
    %v71 = vld [vmem:[#allocation3 + $0xb8] sm:$0xff]
    %v72 = vld [vmem:[#allocation3 + $0xc0] sm:$0xff]
    %v73 = vld [vmem:[#allocation3 + $0xc8] sm:$0xff]
    %v74 = vld [vmem:[#allocation3 + $0xd0] sm:$0xff]
    %v75 = vld [vmem:[#allocation3 + $0xd8] sm:$0xff]
    %v76 = vld [vmem:[#allocation3 + $0xe0] sm:$0xff]
    %v77 = vld [vmem:[#allocation3 + $0xe8] sm:$0xff]
    %v78 = vld [vmem:[#allocation3 + $0xf0] sm:$0xff]
    %v79 = vld [vmem:[#allocation3 + $0xf8] sm:$0xff]
    %v80 = vld [vmem:[#allocation3 + $0x100] sm:$0xff]
    %v81 = vld [vmem:[#allocation3 + $0x108] sm:$0xff]
    %v82 = vld [vmem:[#allocation3 + $0x110] sm:$0xff]
    %v83 = vld [vmem:[#allocation3 + $0x118] sm:$0xff]
    %v84 = vld [vmem:[#allocation3 + $0x120] sm:$0xff]
    %v85 = vld [vmem:[#allocation3 + $0x128] sm:$0xff]
    %v86 = vld [vmem:[#allocation3 + $0x130] sm:$0xff]
    %v87 = vld [vmem:[#allocation3 + $0x138] sm:$0xff]
    %v88 = vld [vmem:[#allocation3 + $0x140] sm:$0xff]
    %v89 = vld [vmem:[#allocation3 + $0x148] sm:$0xff]
    %v90 = vld [vmem:[#allocation3 + $0x150] sm:$0xff]
    %v91 = vld [vmem:[#allocation3 + $0x158] sm:$0xff]
    %v92 = vld [vmem:[#allocation3 + $0x160] sm:$0xff]
    %v93 = vld [vmem:[#allocation3 + $0x168] sm:$0xff]
    %v94 = vld [vmem:[#allocation3 + $0x170] sm:$0xff]
    %v95 = vld [vmem:[#allocation3 + $0x178] sm:$0xff]
    %v96 = vld [vmem:[#allocation3 + $0x180] sm:$0xff]
    %v97 = vld [vmem:[#allocation3 + $0x188] sm:$0xff]
    %v98 = vld [vmem:[#allocation3 + $0x190] sm:$0xff]
    %v99 = vld [vmem:[#allocation3 + $0x198] sm:$0xff]
    %v100 = vld [vmem:[#allocation3 + $0x1a0] sm:$0xff]
    %v101 = vld [vmem:[#allocation3 + $0x1a8] sm:$0xff]
    %v102 = vld [vmem:[#allocation3 + $0x1b0] sm:$0xff]
    %v103 = vld [vmem:[#allocation3 + $0x1b8] sm:$0xff]
    %v104 = vld [vmem:[#allocation3 + $0x1c0] sm:$0xff]
    %v105 = vld [vmem:[#allocation3 + $0x1c8] sm:$0xff]
    %v106 = vld [vmem:[#allocation3 + $0x1d0] sm:$0xff]
    %v107 = vld [vmem:[#allocation3 + $0x1d8] sm:$0xff]
    %v108 = vld [vmem:[#allocation3 + $0x1e0] sm:$0xff]
    %v109 = vld [vmem:[#allocation3 + $0x1e8] sm:$0xff]
    %v110 = vld [vmem:[#allocation3 + $0x1f0] sm:$0xff]
    %v111 = vld [vmem:[#allocation3 + $0x1f8] sm:$0xff]
    %v112 = vadd.f32 %v48, %v49
    %113 = vadd.xlane.f32.xlu0 %v112
    %v114 = vpop.xlane.xlu0 %113
    %v115 = vadd.f32 %v50, %v51
    %116 = vadd.xlane.f32.xlu0 %v115
    %v117 = vpop.xlane.xlu0 %116
    %v118 = vadd.f32 %v52, %v53
    %119 = vadd.xlane.f32.xlu0 %v118
    %v120 = vpop.xlane.xlu0 %119
    %v121 = vadd.f32 %v54, %v55
    %122 = vadd.xlane.f32.xlu0 %v121
    %v123 = vpop.xlane.xlu0 %122
    %v124 = vadd.f32 %v56, %v57
    %125 = vadd.xlane.f32.xlu0 %v124
    %v126 = vpop.xlane.xlu0 %125
    %v127 = vadd.f32 %v58, %v59
    %128 = vadd.xlane.f32.xlu0 %v127
    %v129 = vpop.xlane.xlu0 %128
    %v130 = vadd.f32 %v60, %v61
    %131 = vadd.xlane.f32.xlu0 %v130
    %v132 = vpop.xlane.xlu0 %131
    %v133 = vadd.f32 %v62, %v63
    %134 = vadd.xlane.f32.xlu0 %v133
    %v135 = vpop.xlane.xlu0 %134
    %v136 = vadd.f32 %v64, %v65
    %137 = vadd.xlane.f32.xlu0 %v136
    %v138 = vpop.xlane.xlu0 %137
    %v139 = vadd.f32 %v66, %v67
    %140 = vadd.xlane.f32.xlu0 %v139
    %v141 = vpop.xlane.xlu0 %140
    %v142 = vadd.f32 %v68, %v69
    %143 = vadd.xlane.f32.xlu0 %v142
    %v144 = vpop.xlane.xlu0 %143
    %v145 = vadd.f32 %v70, %v71
    %146 = vadd.xlane.f32.xlu0 %v145
    %v147 = vpop.xlane.xlu0 %146
    %v148 = vadd.f32 %v72, %v73
    %149 = vadd.xlane.f32.xlu0 %v148
    %v150 = vpop.xlane.xlu0 %149
    %v151 = vadd.f32 %v74, %v75
    %152 = vadd.xlane.f32.xlu0 %v151
    %v153 = vpop.xlane.xlu0 %152
    %v154 = vadd.f32 %v76, %v77
    %155 = vadd.xlane.f32.xlu0 %v154
    %v156 = vpop.xlane.xlu0 %155
    %v157 = vadd.f32 %v78, %v79
    %158 = vadd.xlane.f32.xlu0 %v157
    %v159 = vpop.xlane.xlu0 %158
    %v160 = vadd.f32 %v80, %v81
    %161 = vadd.xlane.f32.xlu0 %v160
    %v162 = vpop.xlane.xlu0 %161
    %v163 = vadd.f32 %v82, %v83
    %164 = vadd.xlane.f32.xlu0 %v163
    %v165 = vpop.xlane.xlu0 %164
    %v166 = vadd.f32 %v84, %v85
    %167 = vadd.xlane.f32.xlu0 %v166
    %v168 = vpop.xlane.xlu0 %167
    %v169 = vadd.f32 %v86, %v87
    %170 = vadd.xlane.f32.xlu0 %v169
    %v171 = vpop.xlane.xlu0 %170
    %v172 = vadd.f32 %v88, %v89
    %173 = vadd.xlane.f32.xlu0 %v172
    %v174 = vpop.xlane.xlu0 %173
    %v175 = vadd.f32 %v90, %v91
    %176 = vadd.xlane.f32.xlu0 %v175
    %v177 = vpop.xlane.xlu0 %176
    %v178 = vadd.f32 %v92, %v93
    %179 = vadd.xlane.f32.xlu0 %v178
    %v180 = vpop.xlane.xlu0 %179
    %v181 = vadd.f32 %v94, %v95
    %182 = vadd.xlane.f32.xlu0 %v181
    %v183 = vpop.xlane.xlu0 %182
    %v184 = vadd.f32 %v96, %v97
    %185 = vadd.xlane.f32.xlu0 %v184
    %v186 = vpop.xlane.xlu0 %185
    %v187 = vadd.f32 %v98, %v99
    %188 = vadd.xlane.f32.xlu0 %v187
    %v189 = vpop.xlane.xlu0 %188
    %v190 = vadd.f32 %v100, %v101
    %191 = vadd.xlane.f32.xlu0 %v190
    %v192 = vpop.xlane.xlu0 %191
    %v193 = vadd.f32 %v102, %v103
    %194 = vadd.xlane.f32.xlu0 %v193
    %v195 = vpop.xlane.xlu0 %194
    %v196 = vadd.f32 %v104, %v105
    %197 = vadd.xlane.f32.xlu0 %v196
    %v198 = vpop.xlane.xlu0 %197
    %v199 = vadd.f32 %v106, %v107
    %200 = vadd.xlane.f32.xlu0 %v199
    %v201 = vpop.xlane.xlu0 %200
    %v202 = vadd.f32 %v108, %v109
    %203 = vadd.xlane.f32.xlu0 %v202
    %v204 = vpop.xlane.xlu0 %203
    %v205 = vadd.f32 %v110, %v111
    %206 = vadd.xlane.f32.xlu0 %v205
    %v207 = vpop.xlane.xlu0 %206
    %v208 = vld [vmem:[#allocation2] sm:$0xff]
    %v209 = vld [vmem:[#allocation6] sm:$0xff]
    %v210 = vld [vmem:[#allocation6 + $0x8] sm:$0xff]
    %v211 = vld [vmem:[#allocation6 + $0x10] sm:$0xff]
    %v212 = vld [vmem:[#allocation6 + $0x18] sm:$0xff]
    %v245 = vlaneseq
    %v246 = vand.u32 %v245, 127
    %v247 = vlaneseq
    %v248 = vshrl.u32 %v247, 7
    %v249 = vsub.s32 %v246, %v248
    %v250 = vrot.slane %v114, %v249
    %v251 = vadd.s32 %v246, 4294967288
    %v252 = vlaneseq
    %v253 = vshrl.u32 %v252, 7
    %v254 = vsub.s32 %v251, %v253
    %v255 = vrot.slane %v117, %v254
    %vm256 = vcmask 130112
    %v257 = vsel %vm256, %v255, %v250
    %v258 = vadd.s32 %v246, 4294967280
    %v259 = vlaneseq
    %v260 = vshrl.u32 %v259, 7
    %v261 = vsub.s32 %v258, %v260
    %v262 = vrot.slane %v120, %v261
    %vm263 = vcmask 195712
    %v264 = vsel %vm263, %v262, %v257
    %v265 = vadd.s32 %v246, 4294967272
    %v266 = vlaneseq
    %v267 = vshrl.u32 %v266, 7
    %v268 = vsub.s32 %v265, %v267
    %v269 = vrot.slane %v123, %v268
    %vm270 = vcmask 261312
    %v271 = vsel %vm270, %v269, %v264
    %v272 = vlaneseq
    %v273 = vshrl.u32 %v272, 7
    %v274 = vsub.s32 %v246, %v273
    %v275 = vrot.slane %v126, %v274
    %v276 = vlaneseq
    %v277 = vshrl.u32 %v276, 7
    %v278 = vsub.s32 %v251, %v277
    %v279 = vrot.slane %v129, %v278
    %v280 = vsel %vm256, %v279, %v275
    %v281 = vlaneseq
    %v282 = vshrl.u32 %v281, 7
    %v283 = vsub.s32 %v258, %v282
    %v284 = vrot.slane %v132, %v283
    %v285 = vsel %vm263, %v284, %v280
    %v286 = vlaneseq
    %v287 = vshrl.u32 %v286, 7
    %v288 = vsub.s32 %v265, %v287
    %v289 = vrot.slane %v135, %v288
    %v290 = vsel %vm270, %v289, %v285
    %v291 = vlaneseq
    %v292 = vshrl.u32 %v291, 7
    %v293 = vsub.s32 %v246, %v292
    %v294 = vrot.slane %v138, %v293
    %v295 = vlaneseq
    %v296 = vshrl.u32 %v295, 7
    %v297 = vsub.s32 %v251, %v296
    %v298 = vrot.slane %v141, %v297
    %v299 = vsel %vm256, %v298, %v294
    %v300 = vlaneseq
    %v301 = vshrl.u32 %v300, 7
    %v302 = vsub.s32 %v258, %v301
    %v303 = vrot.slane %v144, %v302
    %v304 = vsel %vm263, %v303, %v299
    %v305 = vlaneseq
    %v306 = vshrl.u32 %v305, 7
    %v307 = vsub.s32 %v265, %v306
    %v308 = vrot.slane %v147, %v307
    %v309 = vsel %vm270, %v308, %v304
    %v310 = vlaneseq
    %v311 = vshrl.u32 %v310, 7
    %v312 = vsub.s32 %v246, %v311
    %v313 = vrot.slane %v150, %v312
    %v314 = vlaneseq
    %v315 = vshrl.u32 %v314, 7
    %v316 = vsub.s32 %v251, %v315
    %v317 = vrot.slane %v153, %v316
    %v318 = vsel %vm256, %v317, %v313
    %v319 = vlaneseq
    %v320 = vshrl.u32 %v319, 7
    %v321 = vsub.s32 %v258, %v320
    %v322 = vrot.slane %v156, %v321
    %v323 = vsel %vm263, %v322, %v318
    %v324 = vlaneseq
    %v325 = vshrl.u32 %v324, 7
    %v326 = vsub.s32 %v265, %v325
    %v327 = vrot.slane %v159, %v326
    %v328 = vsel %vm270, %v327, %v323
    %v329 = vlaneseq
    %v330 = vshrl.u32 %v329, 7
    %v331 = vsub.s32 %v246, %v330
    %v332 = vrot.slane %v162, %v331
    %v333 = vlaneseq
    %v334 = vshrl.u32 %v333, 7
    %v335 = vsub.s32 %v251, %v334
    %v336 = vrot.slane %v165, %v335
    %v337 = vsel %vm256, %v336, %v332
    %v338 = vlaneseq
    %v339 = vshrl.u32 %v338, 7
    %v340 = vsub.s32 %v258, %v339
    %v341 = vrot.slane %v168, %v340
    %v342 = vsel %vm263, %v341, %v337
    %v343 = vlaneseq
    %v344 = vshrl.u32 %v343, 7
    %v345 = vsub.s32 %v265, %v344
    %v346 = vrot.slane %v171, %v345
    %v347 = vsel %vm270, %v346, %v342
    %v348 = vlaneseq
    %v349 = vshrl.u32 %v348, 7
    %v350 = vsub.s32 %v246, %v349
    %v351 = vrot.slane %v174, %v350
    %v352 = vlaneseq
    %v353 = vshrl.u32 %v352, 7
    %v354 = vsub.s32 %v251, %v353
    %v355 = vrot.slane %v177, %v354
    %v356 = vsel %vm256, %v355, %v351
    %v357 = vlaneseq
    %v358 = vshrl.u32 %v357, 7
    %v359 = vsub.s32 %v258, %v358
    %v360 = vrot.slane %v180, %v359
    %v361 = vsel %vm263, %v360, %v356
    %v362 = vlaneseq
    %v363 = vshrl.u32 %v362, 7
    %v364 = vsub.s32 %v265, %v363
    %v365 = vrot.slane %v183, %v364
    %v366 = vsel %vm270, %v365, %v361
    %v367 = vlaneseq
    %v368 = vshrl.u32 %v367, 7
    %v369 = vsub.s32 %v246, %v368
    %v370 = vrot.slane %v186, %v369
    %v371 = vlaneseq
    %v372 = vshrl.u32 %v371, 7
    %v373 = vsub.s32 %v251, %v372
    %v374 = vrot.slane %v189, %v373
    %v375 = vsel %vm256, %v374, %v370
    %v376 = vlaneseq
    %v377 = vshrl.u32 %v376, 7
    %v378 = vsub.s32 %v258, %v377
    %v379 = vrot.slane %v192, %v378
    %v380 = vsel %vm263, %v379, %v375
    %v381 = vlaneseq
    %v382 = vshrl.u32 %v381, 7
    %v383 = vsub.s32 %v265, %v382
    %v384 = vrot.slane %v195, %v383
    %v385 = vsel %vm270, %v384, %v380
    %v386 = vlaneseq
    %v387 = vshrl.u32 %v386, 7
    %v388 = vsub.s32 %v246, %v387
    %v389 = vrot.slane %v198, %v388
    %v390 = vlaneseq
    %v391 = vshrl.u32 %v390, 7
    %v392 = vsub.s32 %v251, %v391
    %v393 = vrot.slane %v201, %v392
    %v394 = vsel %vm256, %v393, %v389
    %v395 = vlaneseq
    %v396 = vshrl.u32 %v395, 7
    %v397 = vsub.s32 %v258, %v396
    %v398 = vrot.slane %v204, %v397
    %v399 = vsel %vm263, %v398, %v394
    %v400 = vlaneseq
    %v401 = vshrl.u32 %v400, 7
    %v402 = vsub.s32 %v265, %v401
    %v403 = vrot.slane %v207, %v402
    %v404 = vsel %vm270, %v403, %v399
    %vm405 = vcmask 1041409
    %v406 = vsel %vm405, %v290, %v271
    %vm407 = vcmask 1042434
    %v408 = vsel %vm407, %v309, %v406
    %vm409 = vcmask 1043459
    %v410 = vsel %vm409, %v328, %v408
    %vm411 = vcmask 1044484
    %v412 = vsel %vm411, %v347, %v410
    %vm413 = vcmask 1045509
    %v414 = vsel %vm413, %v366, %v412
    %vm415 = vcmask 1046534
    %v416 = vsel %vm415, %v385, %v414
    %vm417 = vcmask 1047559
    %v418 = vsel %vm417, %v404, %v416
    %vm419 = vcmask 261120
    %v420 = vsel %vm419, %v418, 0
    %422 = vmatprep.subr.mxu0 0.0
    %423 = vmatpush1.msra.mxu0 %v209
    %424 = vmatprep.subr.mxu0 0.0
    %425 = vmatpush1.msra.mxu0 %v210
    %426 = vmatprep.subr.mxu0 0.0
    %427 = vmatpush1.msra.mxu0 %v211
    %428 = vmatprep.subr.mxu0 0.0
    %429 = vmatpush1.msra.mxu0 %v212
    %430 = vmatprep.subr.mxu0 0.0
    %431 = vmatpush1.msra.mxu0 0.0
    %432 = vmatprep.subr.mxu0 0.0
    %433 = vmatpush1.msra.mxu0 0.0
    %434 = vmatprep.subr.mxu0 0.0
    %435 = vmatpush1.msra.mxu0 0.0
    %436 = vmatprep.subr.mxu0 0.0
    %437 = vmatpush1.msra.mxu0 0.0
    %438 = vmatprep.subr.mxu0 0.0
    %439 = vmatpush1.msra.mxu0 0.0
    %440 = vmatprep.subr.mxu0 0.0
    %441 = vmatpush1.msra.mxu0 0.0
    %442 = vmatprep.subr.mxu0 0.0
    %443 = vmatpush1.msra.mxu0 0.0
    %444 = vmatprep.subr.mxu0 0.0
    %445 = vmatpush1.msra.mxu0 0.0
    %446 = vmatprep.subr.mxu0 0.0
    %447 = vmatpush1.msra.mxu0 0.0
    %448 = vmatprep.subr.mxu0 0.0
    %449 = vmatpush1.msra.mxu0 0.0
    %450 = vmatprep.subr.mxu0 0.0
    %451 = vmatpush1.msra.mxu0 0.0
    %452 = vmatprep.subr.mxu0 0.0
    %453 = vmatpush1.msra.mxu0 0.0
    %454 = vmatprep.subr.mxu0 0.0
    %455 = vmatpush1.msra.mxu0 0.0
    %456 = vmatprep.subr.mxu0 0.0
    %457 = vmatpush1.msra.mxu0 0.0
    %458 = vmatprep.subr.mxu0 0.0
    %459 = vmatpush1.msra.mxu0 0.0
    %460 = vmatprep.subr.mxu0 0.0
    %461 = vmatpush1.msra.mxu0 0.0
    %462 = vmatprep.subr.mxu0 0.0
    %463 = vmatpush1.msra.mxu0 0.0
    %464 = vmatprep.subr.mxu0 0.0
    %465 = vmatpush1.msra.mxu0 0.0
    %466 = vmatprep.subr.mxu0 0.0
    %467 = vmatpush1.msra.mxu0 0.0
    %468 = vmatprep.subr.mxu0 0.0
    %469 = vmatpush1.msra.mxu0 0.0
    %470 = vmatprep.subr.mxu0 0.0
    %471 = vmatpush1.msra.mxu0 0.0
    %472 = vmatprep.subr.mxu0 0.0
    %473 = vmatpush1.msra.mxu0 0.0
    %474 = vmatprep.subr.mxu0 0.0
    %475 = vmatpush1.msra.mxu0 0.0
    %476 = vmatprep.subr.mxu0 0.0
    %477 = vmatpush1.msra.mxu0 0.0
    %478 = vmatprep.subr.mxu0 0.0
    %479 = vmatpush1.msra.mxu0 0.0
    %480 = vmatprep.subr.mxu0 0.0
    %481 = vmatpush1.msra.mxu0 0.0
    %482 = vmatprep.subr.mxu0 0.0
    %483 = vmatpush1.msra.mxu0 0.0
    %484 = vmatprep.subr.mxu0 0.0
    %485 = vmatpush1.msra.mxu0 0.0
    %486 = vmatprep.mubr.f32.mxu0 0.0
    %487 = vmatmul.mubr.f32.gmra.mrb[0].mxu0 %v420
    %v488 = vpop.f32.mrb[0].mxu0
    %v489 = vadd.f32 0.0, %v488
    %v490 = vpop.f32.mrb[0].mxu0
    %491 = vdwg.mxu0
    %v492 = vadd.f32 %v208, %v489
    %493 = vst [vmem:[#allocation2] sm:$0xff] %v492
    // Predicated region
    $region26: #{tpu_custom_call.1} parent=1 // pred_check
      %p494 = pneg %p43
    $region27: #{tpu_custom_call.1} parent=1 // pred_check_branch
      %496 = sbr.rel (%p494) target = $region29
    $region28: #{tpu_custom_call.1} parent=1 // pred_region
      %v497 = vld [vmem:[#allocation2] sm:$0xff]
      %v498 = vld [vmem:[%s2] sm:$0x1]
      %v500 = vlaneseq
      %v501 = vshrl.u32 %v500, 7
      %v502 = vsub.s32 0, %v501
      %v503 = vrot.slane %v498, %v502
      %v505 = vadd.f32 %v497, %v503
      %506 = vst [vmem:[#allocation8] sm:$0xff] %v505
    $region29: #{tpu_custom_call.1} parent=1 // pred_fallthru
      _
    // Predicated region
    $region30: #{tpu_custom_call.1} parent=1 // pred_check
      _
    $region31: #{tpu_custom_call.1} parent=1 // pred_check_branch
      %508 = sbr.rel (0) target = $region33
    $region32: #{tpu_custom_call.1} parent=1 // pred_region
      %s510 = ssub.s32 128, 128
      %511 = vsyncadd [#allocation5], %s510
      %s513 = sshll.u32 [#allocation8], 4
      %s514 = int_to_ptr.vmem [resolvable:$true] %s513
      %516 = dma.vmem_to_hbm [thread:$0]  %s514, 128, %s3, [#allocation5]
    $region33: #{tpu_custom_call.1} parent=1 // pred_fallthru
      _
    // Predicated region
    $region34: #{tpu_custom_call.1} parent=1 // pred_check
      _
    $region35: #{tpu_custom_call.1} parent=1 // pred_check_branch
      %518 = sbr.rel (0) target = $region37
    $region36: #{tpu_custom_call.1} parent=1 // pred_region
      %519 = dma.done [#allocation5], 128
    $region37: #{tpu_custom_call.1} parent=1 // pred_fallthru
      _
    %520 = vsyncpa [#allocation4], 1
    %521 = vsyncpa [#allocation7], 1
    %522 = vsyncpa [#allocation5], 1

</llo_original>
